<compile_context>
chip_gen: v5e
topology: v5e:2x2
jax: 0.10.0
libtpu: 0.0.40
codegen_flags: <defaults>
</compile_context>

<pallas_src>
import jax
import jax.numpy as jnp
import numpy as np
from jax.experimental import pallas as pl
from jax.experimental.pallas import tpu as pltpu

LANE = 128       # lane-dense padded width for the output-layer weights
ROW_ALIGN = 8    # f32 sublane alignment for the batch (row) dimension


def _round_up(v, m):
    return ((v + m - 1) // m) * m


def actor_kernel(x_ref, w1_ref, b1_ref, w2_ref, b2_ref, w3_ref, b3_ref,
                 prob_ref):
    # x arrives as f32; cast to bf16 in-kernel (hides in VPU slack under the
    # matmuls).  Accumulation, bias add, ReLU and softmax all run in f32.
    x = x_ref[...].astype(jnp.bfloat16)

    # Hidden layer 1: Linear + ReLU
    h1 = jnp.dot(x, w1_ref[...], preferred_element_type=jnp.float32) + b1_ref[...]
    h1 = jnp.maximum(h1, 0.0)

    # Hidden layer 2: Linear + ReLU
    h2 = jnp.dot(h1.astype(jnp.bfloat16), w2_ref[...],
                 preferred_element_type=jnp.float32) + b2_ref[...]
    h2 = jnp.maximum(h2, 0.0)

    # Output layer (weights zero-padded to a lane-dense 128 for the MXU).
    logits = jnp.dot(h2.astype(jnp.bfloat16), w3_ref[...],
                     preferred_element_type=jnp.float32) + b3_ref[...]

    # Numerically-stable softmax over exactly the real action lanes
    # (matches nn.Softmax(dim=-1) on the action_dim logits).
    n_act = prob_ref.shape[1]
    lg = logits[:, :n_act]
    m = jnp.max(lg, axis=-1, keepdims=True)
    e = jnp.exp(lg - m)
    denom = jnp.sum(e, axis=-1, keepdims=True)
    prob_ref[...] = (e / denom).astype(prob_ref.dtype)   # exact; sums to 1


def actor_forward(x, params, action_dim, *, tile_b=1024):
    """Fused MLP + softmax.

    x: (B, state_dim) float32.  params: bf16 weights (in,out) + f32 biases,
    with the output layer zero-padded to a multiple of 128 lanes.
    Returns probs (B, action_dim) f32.
    """
    w1, b1, w2, b2, w3p, b3p = params
    B, state_dim = x.shape
    assert action_dim <= w3p.shape[1]

    # --- batch tiling -------------------------------------------------------
    # Minimal alignment: 8 rows (f32 sublane).  Ensure >=2 (even) tiles once
    # there is enough work, so the "parallel" grid axis spans both v7x
    # TensorCores (no-op on v5e/v6e).  tile_b caps the tile; with the narrow
    # output, per-tile VMEM use is tiny, so 1024-4096 all fit comfortably
    # (sweep if chasing the last few %).
    Ba = _round_up(B, ROW_ALIGN)
    n_tiles = pl.cdiv(Ba, tile_b)
    if Ba >= 4 * ROW_ALIGN:
        n_tiles = max(n_tiles, 2)
        n_tiles += n_tiles % 2          # even tile count -> balanced dual-TC
    tb = _round_up(pl.cdiv(Ba, n_tiles), ROW_ALIGN)
    Bp = n_tiles * tb

    # Pad only by the few rows needed for alignment (not to a 1024 multiple).
    xp = x if Bp == B else jnp.pad(x, ((0, Bp - B), (0, 0)))

    h1d, h2d, outp = w1.shape[1], w2.shape[1], w3p.shape[1]
    cost = pl.CostEstimate(
        flops=2 * Bp * (state_dim * h1d + h1d * h2d + h2d * outp),
        transcendentals=Bp * action_dim,
        bytes_accessed=Bp * 4 * (state_dim + action_dim)
        + sum(int(a.size) * a.dtype.itemsize for a in params),
    )

    probs = pl.pallas_call(
        actor_kernel,
        out_shape=jax.ShapeDtypeStruct((Bp, action_dim), jnp.float32),
        grid=(n_tiles,),
        in_specs=[
            pl.BlockSpec((tb, state_dim), lambda i: (i, 0)),   # x: tiled batch
            # weights/biases: full-array blocks, constant index_map -> DMA'd
            # once and VMEM-resident across the whole grid.
            pl.BlockSpec(w1.shape, lambda i: (0, 0)),
            pl.BlockSpec(b1.shape, lambda i: (0, 0)),
            pl.BlockSpec(w2.shape, lambda i: (0, 0)),
            pl.BlockSpec(b2.shape, lambda i: (0, 0)),
            pl.BlockSpec(w3p.shape, lambda i: (0, 0)),
            pl.BlockSpec(b3p.shape, lambda i: (0, 0)),
        ],
        # Narrow output: last block dim == full array dim (action_dim) -> legal.
        out_specs=pl.BlockSpec((tb, action_dim), lambda i: (i, 0)),
        compiler_params=pltpu.CompilerParams(
            dimension_semantics=("parallel",)),                # v7x dual-TC
        cost_estimate=cost,
    )(xp, w1, b1, w2, b2, w3p, b3p)

    return probs if Bp == B else probs[:B]


def init_params(key, state_dim, action_dim, linear_sizes):
    """Deterministic init mimicking torch.nn.Linear default (uniform +/- 1/sqrt(fan_in)).

    Weights stored as (in_features, out_features) in bf16; biases (1, out) in f32.
    The output layer is zero-padded to a multiple of 128 lanes; padded lanes are
    sliced off before the softmax inside the kernel, so the pad value is irrelevant.
    """
    sizes = [(state_dim, linear_sizes[0]),
             (linear_sizes[0], linear_sizes[1]),
             (linear_sizes[1], action_dim)]
    raw = []
    for fan_in, fan_out in sizes:
        key, kw, kb = jax.random.split(key, 3)
        bound = 1.0 / np.sqrt(fan_in)
        w = jax.random.uniform(kw, (fan_in, fan_out), jnp.float32, -bound, bound)
        b = jax.random.uniform(kb, (1, fan_out), jnp.float32, -bound, bound)
        raw += [w, b]
    w1, b1, w2, b2, w3, b3 = raw

    h2 = linear_sizes[1]
    out_pad = _round_up(action_dim, LANE)
    w3p = jnp.zeros((h2, out_pad), jnp.float32).at[:, :action_dim].set(w3)
    b3p = jnp.zeros((1, out_pad), jnp.float32).at[:, :action_dim].set(b3)

    return (w1.astype(jnp.bfloat16), b1,
            w2.astype(jnp.bfloat16), b2,
            w3p.astype(jnp.bfloat16), b3p)


def reference_forward(x, params, action_dim):
    """Plain-JAX reference using the same bf16 weights / f32 accumulation."""
    w1, b1, w2, b2, w3p, b3p = params
    xb = x.astype(jnp.bfloat16)
    h1 = jnp.maximum(jnp.dot(xb, w1, preferred_element_type=jnp.float32) + b1, 0.0)
    h2 = jnp.maximum(jnp.dot(h1.astype(jnp.bfloat16), w2,
                             preferred_element_type=jnp.float32) + b2, 0.0)
    logits = jnp.dot(h2.astype(jnp.bfloat16), w3p,
                     preferred_element_type=jnp.float32) + b3p
    return jax.nn.softmax(logits[:, :action_dim], axis=-1)


if __name__ == "__main__":
    # LunarLander-v2: state_dim=8, action_dim=4; small hidden sizes for the demo.
    state_dim, action_dim = 8, 4
    linear_sizes = [32, 32]
    batch = 8

    key = jax.random.PRNGKey(0)
    key, kx = jax.random.split(key)
    x = jax.random.normal(kx, (batch, state_dim), jnp.float32)
    params = init_params(key, state_dim, action_dim, linear_sizes)

    probs = actor_forward(x, params, action_dim)
    probs = jax.block_until_ready(probs)

    # Sanity check against plain-JAX reference (Categorical(prob) is defined by probs).
    # TODO(synk): torch.distributions.Categorical (sampling / log_prob) is left to
    # the caller; the kernel returns the defining probabilities.
    ref = reference_forward(x, params, action_dim)
    np.testing.assert_allclose(np.asarray(probs), np.asarray(ref),
                               atol=2e-3, rtol=2e-3)
    assert np.allclose(np.asarray(probs).sum(-1), 1.0, atol=1e-3)

    print("KERNEL_OK")
</pallas_src>

<mosaic_0001>
module attributes {stable_mosaic.version = 11 : i64} {
  func.func @actor_kernel(%arg0: i32, %arg1: memref<8x8xf32, #tpu.memory_space<vmem>>, %arg2: memref<8x32xbf16, #tpu.memory_space<vmem>>, %arg3: memref<1x32xf32, #tpu.memory_space<vmem>>, %arg4: memref<32x32xbf16, #tpu.memory_space<vmem>>, %arg5: memref<1x32xf32, #tpu.memory_space<vmem>>, %arg6: memref<32x128xbf16, #tpu.memory_space<vmem>>, %arg7: memref<1x128xf32, #tpu.memory_space<vmem>>, %arg8: memref<8x4xf32, #tpu.memory_space<vmem>>) attributes {dimension_semantics = [#tpu.dimension_semantics<parallel>], iteration_bounds = array<i64: 1>, scalar_prefetch = 0 : i64, scratch_operands = 0 : i64, tpu.core_type = #tpu.core_type<tc>, window_params = [{transform_indices = @transform_0, window_bounds = array<i64: 8, 8>}, {pipeline_mode = #tpu.pipeline_mode<synchronous>, transform_indices = @transform_1, window_bounds = array<i64: 8, 32>}, {pipeline_mode = #tpu.pipeline_mode<synchronous>, transform_indices = @transform_2, window_bounds = array<i64: 1, 32>}, {pipeline_mode = #tpu.pipeline_mode<synchronous>, transform_indices = @transform_3, window_bounds = array<i64: 32, 32>}, {pipeline_mode = #tpu.pipeline_mode<synchronous>, transform_indices = @transform_4, window_bounds = array<i64: 1, 32>}, {pipeline_mode = #tpu.pipeline_mode<synchronous>, transform_indices = @transform_5, window_bounds = array<i64: 32, 128>}, {pipeline_mode = #tpu.pipeline_mode<synchronous>, transform_indices = @transform_6, window_bounds = array<i64: 1, 128>}, {transform_indices = @transform_7, window_bounds = array<i64: 8, 4>}]} {
    %c0 = arith.constant 0 : index
    %c0_0 = arith.constant 0 : index
    %0 = vector.load %arg1[%c0, %c0_0] : memref<8x8xf32, #tpu.memory_space<vmem>>, vector<8x8xf32>
    %1 = arith.truncf %0 : vector<8x8xf32> to vector<8x8xbf16>
    %c0_1 = arith.constant 0 : index
    %c0_2 = arith.constant 0 : index
    %2 = vector.load %arg2[%c0_1, %c0_2] : memref<8x32xbf16, #tpu.memory_space<vmem>>, vector<8x32xbf16>
    %cst = arith.constant dense<0.000000e+00> : vector<8x32xf32>
    %3 = tpu.matmul %1, %2, %cst {dimension_numbers = #tpu.dot_dimension_numbers<[1], [0], [0], [1], [0, 0, 1, 1], [], []>} : vector<8x8xbf16>, vector<8x32xbf16>, vector<8x32xf32> -> vector<8x32xf32>
    %c0_3 = arith.constant 0 : index
    %c0_4 = arith.constant 0 : index
    %4 = vector.load %arg3[%c0_3, %c0_4] : memref<1x32xf32, #tpu.memory_space<vmem>>, vector<1x32xf32>
    %5 = vector.broadcast %4 : vector<1x32xf32> to vector<8x32xf32>
    %6 = arith.addf %3, %5 : vector<8x32xf32>
    %cst_5 = arith.constant 0.000000e+00 : f32
    %7 = vector.broadcast %cst_5 : f32 to vector<8x32xf32>
    %8 = arith.maximumf %6, %7 : vector<8x32xf32>
    %9 = arith.truncf %8 : vector<8x32xf32> to vector<8x32xbf16>
    %c0_6 = arith.constant 0 : index
    %c0_7 = arith.constant 0 : index
    %10 = vector.load %arg4[%c0_6, %c0_7] : memref<32x32xbf16, #tpu.memory_space<vmem>>, vector<32x32xbf16>
    %cst_8 = arith.constant dense<0.000000e+00> : vector<8x32xf32>
    %11 = tpu.matmul %9, %10, %cst_8 {dimension_numbers = #tpu.dot_dimension_numbers<[1], [0], [0], [1], [0, 0, 1, 1], [], []>} : vector<8x32xbf16>, vector<32x32xbf16>, vector<8x32xf32> -> vector<8x32xf32>
    %c0_9 = arith.constant 0 : index
    %c0_10 = arith.constant 0 : index
    %12 = vector.load %arg5[%c0_9, %c0_10] : memref<1x32xf32, #tpu.memory_space<vmem>>, vector<1x32xf32>
    %13 = vector.broadcast %12 : vector<1x32xf32> to vector<8x32xf32>
    %14 = arith.addf %11, %13 : vector<8x32xf32>
    %cst_11 = arith.constant 0.000000e+00 : f32
    %15 = vector.broadcast %cst_11 : f32 to vector<8x32xf32>
    %16 = arith.maximumf %14, %15 : vector<8x32xf32>
    %17 = arith.truncf %16 : vector<8x32xf32> to vector<8x32xbf16>
    %c0_12 = arith.constant 0 : index
    %c0_13 = arith.constant 0 : index
    %18 = vector.load %arg6[%c0_12, %c0_13] : memref<32x128xbf16, #tpu.memory_space<vmem>>, vector<32x128xbf16>
    %cst_14 = arith.constant dense<0.000000e+00> : vector<8x128xf32>
    %19 = tpu.matmul %17, %18, %cst_14 {dimension_numbers = #tpu.dot_dimension_numbers<[1], [0], [0], [1], [0, 0, 1, 1], [], []>} : vector<8x32xbf16>, vector<32x128xbf16>, vector<8x128xf32> -> vector<8x128xf32>
    %c0_15 = arith.constant 0 : index
    %c0_16 = arith.constant 0 : index
    %20 = vector.load %arg7[%c0_15, %c0_16] : memref<1x128xf32, #tpu.memory_space<vmem>>, vector<1x128xf32>
    %21 = vector.broadcast %20 : vector<1x128xf32> to vector<8x128xf32>
    %22 = arith.addf %19, %21 : vector<8x128xf32>
    %23 = vector.extract_strided_slice %22 {offsets = [0, 0], sizes = [8, 4], strides = [1, 1]} : vector<8x128xf32> to vector<8x4xf32>
    %cst_17 = arith.constant dense<0xFF800000> : vector<8xf32>
    %24 = vector.multi_reduction <maximumf>, %23, %cst_17 [1] : vector<8x4xf32> to vector<8xf32>
    %25 = vector.shape_cast %24 : vector<8xf32> to vector<8x1xf32>
    %26 = vector.broadcast %25 : vector<8x1xf32> to vector<8x4xf32>
    %27 = arith.subf %23, %26 : vector<8x4xf32>
    %28 = math.exp %27 : vector<8x4xf32>
    %cst_18 = arith.constant dense<0.000000e+00> : vector<8xf32>
    %29 = vector.multi_reduction <add>, %28, %cst_18 [1] : vector<8x4xf32> to vector<8xf32>
    %30 = vector.shape_cast %29 : vector<8xf32> to vector<8x1xf32>
    %31 = vector.broadcast %30 : vector<8x1xf32> to vector<8x4xf32>
    %32 = arith.divf %28, %31 : vector<8x4xf32>
    %c0_19 = arith.constant 0 : index
    %c0_20 = arith.constant 0 : index
    %33 = vector.load %arg8[%c0_19, %c0_20] : memref<8x4xf32, #tpu.memory_space<vmem>>, vector<8x4xf32>
    tpu.vector_store %arg8[%c0_19, %c0_20], %32 {strides = array<i32>} : memref<8x4xf32, #tpu.memory_space<vmem>>, vector<8x4xf32>,
    return
  }
  func.func @transform_0(%arg0: i32) -> (i32, i32) {
    %c0_i32 = arith.constant 0 : i32
    %c0_i32_0 = arith.constant 0 : i32
    return %arg0, %c0_i32 : i32, i32
  }
  func.func @transform_1(%arg0: i32) -> (i32, i32) {
    %c0_i32 = arith.constant 0 : i32
    %c0_i32_0 = arith.constant 0 : i32
    %c0_i32_1 = arith.constant 0 : i32
    return %c0_i32, %c0_i32_0 : i32, i32
  }
  func.func @transform_2(%arg0: i32) -> (i32, i32) {
    %c0_i32 = arith.constant 0 : i32
    %c0_i32_0 = arith.constant 0 : i32
    %c0_i32_1 = arith.constant 0 : i32
    return %c0_i32, %c0_i32_0 : i32, i32
  }
  func.func @transform_3(%arg0: i32) -> (i32, i32) {
    %c0_i32 = arith.constant 0 : i32
    %c0_i32_0 = arith.constant 0 : i32
    %c0_i32_1 = arith.constant 0 : i32
    return %c0_i32, %c0_i32_0 : i32, i32
  }
  func.func @transform_4(%arg0: i32) -> (i32, i32) {
    %c0_i32 = arith.constant 0 : i32
    %c0_i32_0 = arith.constant 0 : i32
    %c0_i32_1 = arith.constant 0 : i32
    return %c0_i32, %c0_i32_0 : i32, i32
  }
  func.func @transform_5(%arg0: i32) -> (i32, i32) {
    %c0_i32 = arith.constant 0 : i32
    %c0_i32_0 = arith.constant 0 : i32
    %c0_i32_1 = arith.constant 0 : i32
    return %c0_i32, %c0_i32_0 : i32, i32
  }
  func.func @transform_6(%arg0: i32) -> (i32, i32) {
    %c0_i32 = arith.constant 0 : i32
    %c0_i32_0 = arith.constant 0 : i32
    %c0_i32_1 = arith.constant 0 : i32
    return %c0_i32, %c0_i32_0 : i32, i32
  }
  func.func @transform_7(%arg0: i32) -> (i32, i32) {
    %c0_i32 = arith.constant 0 : i32
    %c0_i32_0 = arith.constant 0 : i32
    return %arg0, %c0_i32 : i32, i32
  }
}

</mosaic_0001>

<llo_original>
// kernel: tpu_custom_call.1
$region0: #{tpu_custom_call.1}
  #allocation0 [shape = 'u32[]', space=smem, size = 0x4, offset = 0x4, fixed_abs, tag = 'smem constant byte address 0x4 - core index']
  #allocation1 [shape = 'u32[72,128]{1,0:T(1,128)}', space=vmem, size = 0x9000, scoped, tag = 'internal scratch']
  %s0 = inlined_call_operand.hbm [shape: f32[8,8], index: 0, kind: input, shape index: {}]
  %s1 = inlined_call_operand.hbm [shape: bf16[8,32], index: 1, kind: input, shape index: {}]
  %s2 = inlined_call_operand.vmem [shape: f32[1,32], index: 2, kind: input, shape index: {}]
  %s3 = inlined_call_operand.hbm [shape: bf16[32,32], index: 3, kind: input, shape index: {}]
  %s4 = inlined_call_operand.vmem [shape: f32[1,32], index: 4, kind: input, shape index: {}]
  %s5 = inlined_call_operand.hbm [shape: bf16[32,128], index: 5, kind: input, shape index: {}]
  %s6 = inlined_call_operand.vmem [shape: f32[1,128], index: 6, kind: input, shape index: {}]
  %s7 = inlined_call_operand.vmem [shape: f32[8,4], index: 7, kind: output, shape index: {}]
  %s8 = sld [smem:[#allocation0]]
  $region54: #{tpu_custom_call.1} parent=0
    _
  %s10 = ssub.s32 1, %s8
  %s11 = scalar_select 0, %s10, %s8
  $region1: #{tpu_custom_call.1} parent=0
    #allocation2 [shape = 'u8[4096]{0}', space=vmem, size = 0x1000, scoped, tag = 'input window, operand 0, single buffered']
    #allocation3 [shape = 's32[1]{0}', space=sflag, size = 0x4, scoped, tag = 'scoped memory for tpu_custom_call.1']
    #allocation4 [shape = 'u8[2048]{0}', space=vmem, size = 0x800, scoped, tag = 'input window, operand 1, single buffered']
    #allocation5 [shape = 's32[1]{0}', space=sflag, size = 0x4, scoped, tag = 'scoped memory for tpu_custom_call.1']
    #allocation6 [shape = 'u8[8192]{0}', space=vmem, size = 0x2000, scoped, tag = 'input window, operand 3, single buffered']
    #allocation7 [shape = 'u8[8192]{0}', space=vmem, size = 0x2000, scoped, tag = 'input window, operand 5, single buffered']
    #allocation8 [shape = 's32[1]{0}', space=sflag, size = 0x4, scoped, tag = 'scoped memory for tpu_custom_call.1']
    %12 = vsyncpa [#allocation3], 0
    %13 = vsyncpa [#allocation5], 0
    %14 = vsyncpa [#allocation8], 0
    // Predicated region
    $region2: #{tpu_custom_call.1} parent=1 // pred_check
      _
    $region3: #{tpu_custom_call.1} parent=1 // pred_check_branch
      %16 = sbr.rel (0) target = $region5
    $region4: #{tpu_custom_call.1} parent=1 // pred_region
      %18 = vsyncadd [#allocation3], 0
      %s20 = sshll.u32 %s0, 4
      %s21 = int_to_ptr.hbm [resolvable:$true] %s20
      %s22 = sshll.u32 [#allocation2], 4
      %s23 = int_to_ptr.vmem [resolvable:$true] %s22
      %25 = dma.hbm_to_vmem [thread:$0]  %s21, 128, %s23, [#allocation3]
    $region5: #{tpu_custom_call.1} parent=1 // pred_fallthru
      _
    // Predicated region
    $region6: #{tpu_custom_call.1} parent=1 // pred_check
      _
    $region7: #{tpu_custom_call.1} parent=1 // pred_check_branch
      %27 = sbr.rel (0) target = $region9
    $region8: #{tpu_custom_call.1} parent=1 // pred_region
      %29 = vsyncadd [#allocation5], 0
      %s31 = sshll.u32 %s1, 4
      %s32 = int_to_ptr.hbm [resolvable:$true] %s31
      %s33 = sshll.u32 [#allocation4], 4
      %s34 = int_to_ptr.vmem [resolvable:$true] %s33
      %36 = dma.hbm_to_vmem [thread:$0]  %s32, 64, %s34, [#allocation5]
    $region9: #{tpu_custom_call.1} parent=1 // pred_fallthru
      _
    // Predicated region
    $region10: #{tpu_custom_call.1} parent=1 // pred_check
      _
    $region11: #{tpu_custom_call.1} parent=1 // pred_check_branch
      %38 = sbr.rel (0) target = $region13
    $region12: #{tpu_custom_call.1} parent=1 // pred_region
      _
    $region13: #{tpu_custom_call.1} parent=1 // pred_fallthru
      _
    // Predicated region
    $region14: #{tpu_custom_call.1} parent=1 // pred_check
      _
    $region15: #{tpu_custom_call.1} parent=1 // pred_check_branch
      %40 = sbr.rel (0) target = $region17
    $region16: #{tpu_custom_call.1} parent=1 // pred_region
      %42 = vsyncadd [#allocation5], 0
      %s43 = sshll.u32 %s3, 4
      %s44 = int_to_ptr.hbm [resolvable:$true] %s43
      %s45 = sshll.u32 [#allocation6], 4
      %s46 = int_to_ptr.vmem [resolvable:$true] %s45
      %51 = dma.hbm_to_vmem [thread:$0]  %s44, 256, %s46, [#allocation5], 64, 64, 4
    $region17: #{tpu_custom_call.1} parent=1 // pred_fallthru
      _
    // Predicated region
    $region18: #{tpu_custom_call.1} parent=1 // pred_check
      _
    $region19: #{tpu_custom_call.1} parent=1 // pred_check_branch
      %53 = sbr.rel (0) target = $region21
    $region20: #{tpu_custom_call.1} parent=1 // pred_region
      _
    $region21: #{tpu_custom_call.1} parent=1 // pred_fallthru
      _
    // Predicated region
    $region22: #{tpu_custom_call.1} parent=1 // pred_check
      _
    $region23: #{tpu_custom_call.1} parent=1 // pred_check_branch
      %55 = sbr.rel (0) target = $region25
    $region24: #{tpu_custom_call.1} parent=1 // pred_region
      %57 = vsyncadd [#allocation8], 0
      %s58 = sshll.u32 %s5, 4
      %s59 = int_to_ptr.hbm [resolvable:$true] %s58
      %s60 = sshll.u32 [#allocation7], 4
      %s61 = int_to_ptr.vmem [resolvable:$true] %s60
      %66 = dma.hbm_to_vmem [thread:$0]  %s59, 256, %s61, [#allocation8], 64, 64, 4
    $region25: #{tpu_custom_call.1} parent=1 // pred_fallthru
      _
    // Predicated region
    $region26: #{tpu_custom_call.1} parent=1 // pred_check
      _
    $region27: #{tpu_custom_call.1} parent=1 // pred_check_branch
      %68 = sbr.rel (0) target = $region29
    $region28: #{tpu_custom_call.1} parent=1 // pred_region
      _
    $region29: #{tpu_custom_call.1} parent=1 // pred_fallthru
      _
    // Predicated region
    $region30: #{tpu_custom_call.1} parent=1 // pred_check
      _
    $region31: #{tpu_custom_call.1} parent=1 // pred_check_branch
      %70 = sbr.rel (0) target = $region33
    $region32: #{tpu_custom_call.1} parent=1 // pred_region
      %72 = dma.done [#allocation3], 128
    $region33: #{tpu_custom_call.1} parent=1 // pred_fallthru
      _
    // Predicated region
    $region34: #{tpu_custom_call.1} parent=1 // pred_check
      _
    $region35: #{tpu_custom_call.1} parent=1 // pred_check_branch
      %74 = sbr.rel (0) target = $region37
    $region36: #{tpu_custom_call.1} parent=1 // pred_region
      %76 = dma.done [#allocation5], 64
    $region37: #{tpu_custom_call.1} parent=1 // pred_fallthru
      _
    // Predicated region
    $region38: #{tpu_custom_call.1} parent=1 // pred_check
      _
    $region39: #{tpu_custom_call.1} parent=1 // pred_check_branch
      %78 = sbr.rel (0) target = $region41
    $region40: #{tpu_custom_call.1} parent=1 // pred_region
      %80 = dma.done [#allocation5], 256
    $region41: #{tpu_custom_call.1} parent=1 // pred_fallthru
      _
    // Predicated region
    $region42: #{tpu_custom_call.1} parent=1 // pred_check
      _
    $region43: #{tpu_custom_call.1} parent=1 // pred_check_branch
      %82 = sbr.rel (0) target = $region45
    $region44: #{tpu_custom_call.1} parent=1 // pred_region
      %84 = dma.done [#allocation8], 256
    $region45: #{tpu_custom_call.1} parent=1 // pred_fallthru
      _
    %v86 = vld [vmem:[#allocation2] sm:$0xff]
    %v87 = vpack.c.bf16 %v86, %v86
    %v88 = vld [vmem:[#allocation4] sm:$0xf]
    %v89 = vld [vmem:[%s2] sm:$0x1]
    %v91 = vperm.slane %v89, 0
    %vm93 = vcmask 64512
    %v95 = vsel %vm93, %v87, 0
    %vm97 = vcmask 1043456
    %v99 = vsel %vm97, %v88, 0
    %101 = vmatpush.bf16.msra.mxu0 0
    %102 = vmatpush.bf16.msra.mxu0 0
    %103 = vmatpush.bf16.msra.mxu0 0
    %104 = vmatpush.bf16.msra.mxu0 0
    %105 = vmatpush.bf16.msra.mxu0 0
    %106 = vmatpush.bf16.msra.mxu0 0
    %107 = vmatpush.bf16.msra.mxu0 0
    %108 = vmatpush.bf16.msra.mxu0 %v99
    %109 = vmatmul.bf16.gmra.mxu0 %v95
    %v110 = vpop.f32.mrf.mxu0
    %v111 = vadd.f32 %v91, %v110
    %v112 = vpop.f32.mrf.mxu0
    %113 = vdwg.mxu0
    %v114 = vmax.f32 %v111, 0.0
    %v115 = vpack.c.bf16 %v114, %v114
    %v116 = vld [vmem:[#allocation6] sm:$0xf]
    %v117 = vld [vmem:[#allocation6 + $0x4] sm:$0xf]
    %v118 = vld [vmem:[#allocation6 + $0x8] sm:$0xf]
    %v119 = vld [vmem:[#allocation6 + $0xc] sm:$0xf]
    %v120 = vld [vmem:[%s4] sm:$0x1]
    %v122 = vperm.slane %v120, 0
    %v128 = vunpack.c.l.b16 %v116
    %v129 = vunpack.c.l.b16 %v117
    %v130 = vunpack.c.l.b16 %v118
    %v131 = vunpack.c.l.b16 %v119
    %v132 = vpack.c.b16 %v129, %v128
    %v133 = vpack.c.b16 %v131, %v130
    %vm136 = vcmask 261120
    %v138 = vsel %vm136, %v115, 0
    %140 = vmatpush.bf16.msra.mxu0 0
    %141 = vmatpush.bf16.msra.mxu0 0
    %142 = vmatpush.bf16.msra.mxu0 0
    %143 = vmatpush.bf16.msra.mxu0 0
    %144 = vmatpush.bf16.msra.mxu0 0
    %145 = vmatpush.bf16.msra.mxu0 0
    %146 = vmatpush.bf16.msra.mxu0 %v133
    %147 = vmatpush.bf16.msra.mxu0 %v132
    %148 = vmatmul.bf16.gmra.mxu0 %v138
    %v149 = vpop.f32.mrf.mxu0
    %v150 = vadd.f32 %v122, %v149
    %v151 = vpop.f32.mrf.mxu0
    %152 = vdwg.mxu0
    %v153 = vmax.f32 %v150, 0.0
    %v154 = vpack.c.bf16 %v153, %v153
    %v155 = vld [vmem:[#allocation7] sm:$0xf]
    %v156 = vld [vmem:[#allocation7 + $0x4] sm:$0xf]
    %v157 = vld [vmem:[#allocation7 + $0x8] sm:$0xf]
    %v158 = vld [vmem:[#allocation7 + $0xc] sm:$0xf]
    %v159 = vld [vmem:[%s6] sm:$0x1]
    %v161 = vperm.slane %v159, 0
    %v167 = vunpack.c.l.b16 %v155
    %v168 = vunpack.c.l.b16 %v156
    %v169 = vunpack.c.l.b16 %v157
    %v170 = vunpack.c.l.b16 %v158
    %v171 = vpack.c.b16 %v168, %v167
    %v172 = vpack.c.b16 %v170, %v169
    %v176 = vsel %vm136, %v154, 0
    %178 = vmatpush.bf16.msra.mxu0 0
    %179 = vmatpush.bf16.msra.mxu0 0
    %180 = vmatpush.bf16.msra.mxu0 0
    %181 = vmatpush.bf16.msra.mxu0 0
    %182 = vmatpush.bf16.msra.mxu0 0
    %183 = vmatpush.bf16.msra.mxu0 0
    %184 = vmatpush.bf16.msra.mxu0 %v172
    %185 = vmatpush.bf16.msra.mxu0 %v171
    %186 = vmatmul.bf16.gmra.mxu0 %v176
    %v187 = vpop.f32.mrf.mxu0
    %v188 = vadd.f32 %v161, %v187
    %v189 = vpop.f32.mrf.mxu0
    %190 = vdwg.mxu0
    %vm191 = vcmask 31744
    %v192 = vsel %vm191, %v188, -inf
    %193 = vmax.xlane.f32.xlu0 %v192
    %v194 = vpop.xlane.xlu0 %193
    %v195 = vsub.f32 %v188, %v194
    %v196 = vmul.f32 %v195, 1.442695
    %v197 = vpow.pop %v196
    %v198 = vsel %vm191, %v197, 0.0
    %199 = vadd.xlane.f32.xlu0 %v198
    %v200 = vpop.xlane.xlu0 %199
    %v201 = vrcp.pop %v200
    %v202 = vmul.f32 %v200, %v201
    %v203 = vsub.f32 1.0, %v202
    %v204 = vmul.f32 %v201, %v203
    %v205 = vadd.f32 %v201, %v204
    %vm206 = vweird.f32 %v200
    %vm207 = vweird.f32 %v201
    %vm208 = vmor %vm206, %vm207
    %v209 = vsel %vm208, %v201, %v205
    %v210 = vand.u32 2147483647, %v200
    %vm211 = vcmp.eq.f32.partialorder %v210, 8.507059e+37
    %v212 = vand.u32 %v200, 2147483648
    %v213 = vor.u32 1.1754944e-38, %v212
    %v214 = vsel %vm211, %v213, %v209
    %v215 = vmul.f32 %v197, %v214
    %216 = vst.msk [vmem:[%s7] sm:$0xff] %vm191, %v215
    // Predicated region
    $region46: #{tpu_custom_call.1} parent=1 // pred_check
      _
    $region47: #{tpu_custom_call.1} parent=1 // pred_check_branch
      %218 = sbr.rel (0) target = $region49
    $region48: #{tpu_custom_call.1} parent=1 // pred_region
      _
    $region49: #{tpu_custom_call.1} parent=1 // pred_fallthru
      _
    // Predicated region
    $region50: #{tpu_custom_call.1} parent=1 // pred_check
      _
    $region51: #{tpu_custom_call.1} parent=1 // pred_check_branch
      %220 = sbr.rel (0) target = $region53
    $region52: #{tpu_custom_call.1} parent=1 // pred_region
      _
    $region53: #{tpu_custom_call.1} parent=1 // pred_fallthru
      _
    %221 = vsyncpa [#allocation3], 1
    %222 = vsyncpa [#allocation5], 1
    %223 = vsyncpa [#allocation8], 1

</llo_original>
